<compile_context>
chip_gen: v7x
topology: tpu7x:2x2x1
jax: 0.10.0
libtpu: 0.0.40
codegen_flags: <defaults>
</compile_context>

<pallas_src>
import jax
import jax.numpy as jnp
from jax.experimental import pallas as pl
from jax.experimental.pallas import tpu as pltpu


def _round_up(x, m):
    return (x + m - 1) // m * m


def node_add_kernel(h_ref, c_ref, w1h_ref, w1c_ref, b1_ref, w2_ref, b2_ref, o_ref):
    # First linear: concat folded into two dots accumulated in f32
    #   s = h_G @ W1_h + c @ W1_c + b1
    s = (
        jnp.dot(h_ref[...], w1h_ref[...], preferred_element_type=jnp.float32)
        + jnp.dot(c_ref[...], w1c_ref[...], preferred_element_type=jnp.float32)
        + b1_ref[...]
    )
    # ReLU
    s = jnp.maximum(s, 0.0)
    # Second linear, written at the true (unpadded) width natts.
    o_ref[...] = (
        jnp.dot(s, w2_ref[...], preferred_element_type=jnp.float32) + b2_ref[...]
    ).astype(o_ref.dtype)


def prepare_node_add_params(w1, b1, w2, b2):
    """One-time (model-load) weight layout prep — hoisted out of the hot path.

    w1 : [sdim, 2*sdim]      (PyTorch Linear weight layout: [out, in])
    b1 : [sdim]
    w2 : [num_node_atts, sdim]
    b2 : [num_node_atts]

    Returns weights laid out as [in, out]; W1 is split into its h_G-half and
    c-half so the kernel never needs a concatenated input.
    """
    sdim = w1.shape[0]
    natts = w2.shape[0]

    w1_t = jnp.asarray(w1, jnp.float32).T                 # [2*sdim, sdim]
    w1_h = w1_t[:sdim, :]                                  # [sdim, sdim]  (h_G part)
    w1_c = w1_t[sdim:, :]                                  # [sdim, sdim]  (c part)
    b1_2d = jnp.asarray(b1, jnp.float32).reshape(1, sdim)  # [1, sdim]
    w2_t = jnp.asarray(w2, jnp.float32).T                  # [sdim, natts]
    b2_2d = jnp.asarray(b2, jnp.float32).reshape(1, natts) # [1, natts]
    return w1_h, w1_c, b1_2d, w2_t, b2_2d, natts


def _pick_row_tile(B):
    """Row tile: multiple of 8, big enough to amortize ~0.35us/step overhead,
    small enough to leave >=2 (ideally >=4) grid steps for pipelining and
    v7x 2-TC sharding.  Tiny batches use one 8-aligned tile."""
    if B <= 16:
        return _round_up(max(B, 1), 8)
    if B <= 2048:
        return max(8, _round_up((B + 1) // 2, 8))   # ~2 steps
    return min(1024, max(8, _round_up((B + 3) // 4, 8)))  # >=4 steps, cap 1024


def node_add(h_G, c, w1_h, w1_c, b1_2d, w2_t, b2_2d, natts):
    """
    h_G, c : [B, sdim] float32
    Prepared params from prepare_node_add_params().
    Returns: [B, natts] float32
    """
    B, sdim = h_G.shape
    TB = _pick_row_tile(B)
    grid = (pl.cdiv(B, TB),)

    out = pl.pallas_call(
        node_add_kernel,
        out_shape=jax.ShapeDtypeStruct((B, natts), jnp.float32),
        grid=grid,
        in_specs=[
            pl.BlockSpec((TB, sdim), lambda i: (i, 0)),    # h_G row tile
            pl.BlockSpec((TB, sdim), lambda i: (i, 0)),    # c row tile
            pl.BlockSpec((sdim, sdim), lambda i: (0, 0)),  # W1 (h half), VMEM-resident
            pl.BlockSpec((sdim, sdim), lambda i: (0, 0)),  # W1 (c half), VMEM-resident
            pl.BlockSpec((1, sdim), lambda i: (0, 0)),     # b1
            pl.BlockSpec((sdim, natts), lambda i: (0, 0)), # W2 (unpadded)
            pl.BlockSpec((1, natts), lambda i: (0, 0)),    # b2
        ],
        out_specs=pl.BlockSpec((TB, natts), lambda i: (i, 0)),
        compiler_params=pltpu.CompilerParams(
            dimension_semantics=("parallel",),
        ),
    )(h_G, c, w1_h, w1_c, b1_2d, w2_t, b2_2d)

    return out


if __name__ == "__main__":
    B = 8
    sdim = 32
    num_node_atts = 5

    key = jax.random.PRNGKey(0)
    k_h, k_c, k_w1, k_b1, k_w2, k_b2 = jax.random.split(key, 6)

    # Inputs
    h_G = jax.random.normal(k_h, (B, sdim), dtype=jnp.float32)
    c = jax.random.normal(k_c, (B, sdim), dtype=jnp.float32)

    # Deterministic parameter init (PyTorch Linear shapes: weight [out, in]).
    w1 = jax.random.normal(k_w1, (sdim, 2 * sdim), dtype=jnp.float32) * 0.1
    b1 = jax.random.normal(k_b1, (sdim,), dtype=jnp.float32) * 0.1
    w2 = jax.random.normal(k_w2, (num_node_atts, sdim), dtype=jnp.float32) * 0.1
    b2 = jax.random.normal(k_b2, (num_node_atts,), dtype=jnp.float32) * 0.1

    # One-time weight layout prep (hoisted out of the per-call hot path).
    w1_h, w1_c, b1_2d, w2_t, b2_2d, natts = prepare_node_add_params(w1, b1, w2, b2)

    out = node_add(h_G, c, w1_h, w1_c, b1_2d, w2_t, b2_2d, natts)
    out = jax.block_until_ready(out)

    # Pure-JAX reference check (same math as the PyTorch forward).
    x = jnp.concatenate([h_G, c], axis=1)
    s_ref = jnp.maximum(x @ w1.T + b1, 0.0)
    ref = s_ref @ w2.T + b2
    assert out.shape == (B, num_node_atts)
    assert jnp.allclose(out, ref, atol=1e-5, rtol=1e-5)

    print("KERNEL_OK")
</pallas_src>

<mosaic_0001>
module attributes {stable_mosaic.version = 11 : i64} {
  func.func @node_add_kernel(%arg0: i32, %arg1: memref<8x32xf32, #tpu.memory_space<vmem>>, %arg2: memref<8x32xf32, #tpu.memory_space<vmem>>, %arg3: memref<32x32xf32, #tpu.memory_space<vmem>>, %arg4: memref<32x32xf32, #tpu.memory_space<vmem>>, %arg5: memref<1x32xf32, #tpu.memory_space<vmem>>, %arg6: memref<32x5xf32, #tpu.memory_space<vmem>>, %arg7: memref<1x5xf32, #tpu.memory_space<vmem>>, %arg8: memref<8x5xf32, #tpu.memory_space<vmem>>) attributes {dimension_semantics = [#tpu.dimension_semantics<parallel>], iteration_bounds = array<i64: 1>, scalar_prefetch = 0 : i64, scratch_operands = 0 : i64, tpu.core_type = #tpu.core_type<tc>, window_params = [{transform_indices = @transform_0, window_bounds = array<i64: 8, 32>}, {transform_indices = @transform_1, window_bounds = array<i64: 8, 32>}, {pipeline_mode = #tpu.pipeline_mode<synchronous>, transform_indices = @transform_2, window_bounds = array<i64: 32, 32>}, {pipeline_mode = #tpu.pipeline_mode<synchronous>, transform_indices = @transform_3, window_bounds = array<i64: 32, 32>}, {pipeline_mode = #tpu.pipeline_mode<synchronous>, transform_indices = @transform_4, window_bounds = array<i64: 1, 32>}, {pipeline_mode = #tpu.pipeline_mode<synchronous>, transform_indices = @transform_5, window_bounds = array<i64: 32, 5>}, {pipeline_mode = #tpu.pipeline_mode<synchronous>, transform_indices = @transform_6, window_bounds = array<i64: 1, 5>}, {transform_indices = @transform_7, window_bounds = array<i64: 8, 5>}]} {
    %c0 = arith.constant 0 : index
    %c0_0 = arith.constant 0 : index
    %0 = vector.load %arg1[%c0, %c0_0] : memref<8x32xf32, #tpu.memory_space<vmem>>, vector<8x32xf32>
    %c0_1 = arith.constant 0 : index
    %c0_2 = arith.constant 0 : index
    %1 = vector.load %arg3[%c0_1, %c0_2] : memref<32x32xf32, #tpu.memory_space<vmem>>, vector<32x32xf32>
    %cst = arith.constant dense<0.000000e+00> : vector<8x32xf32>
    %2 = tpu.matmul %0, %1, %cst {dimension_numbers = #tpu.dot_dimension_numbers<[1], [0], [0], [1], [0, 0, 1, 1], [], []>} : vector<8x32xf32>, vector<32x32xf32>, vector<8x32xf32> -> vector<8x32xf32>
    %c0_3 = arith.constant 0 : index
    %c0_4 = arith.constant 0 : index
    %3 = vector.load %arg2[%c0_3, %c0_4] : memref<8x32xf32, #tpu.memory_space<vmem>>, vector<8x32xf32>
    %c0_5 = arith.constant 0 : index
    %c0_6 = arith.constant 0 : index
    %4 = vector.load %arg4[%c0_5, %c0_6] : memref<32x32xf32, #tpu.memory_space<vmem>>, vector<32x32xf32>
    %cst_7 = arith.constant dense<0.000000e+00> : vector<8x32xf32>
    %5 = tpu.matmul %3, %4, %cst_7 {dimension_numbers = #tpu.dot_dimension_numbers<[1], [0], [0], [1], [0, 0, 1, 1], [], []>} : vector<8x32xf32>, vector<32x32xf32>, vector<8x32xf32> -> vector<8x32xf32>
    %6 = arith.addf %2, %5 : vector<8x32xf32>
    %c0_8 = arith.constant 0 : index
    %c0_9 = arith.constant 0 : index
    %7 = vector.load %arg5[%c0_8, %c0_9] : memref<1x32xf32, #tpu.memory_space<vmem>>, vector<1x32xf32>
    %8 = vector.broadcast %7 : vector<1x32xf32> to vector<8x32xf32>
    %9 = arith.addf %6, %8 : vector<8x32xf32>
    %cst_10 = arith.constant 0.000000e+00 : f32
    %10 = vector.broadcast %cst_10 : f32 to vector<8x32xf32>
    %11 = arith.maximumf %9, %10 : vector<8x32xf32>
    %c0_11 = arith.constant 0 : index
    %c0_12 = arith.constant 0 : index
    %12 = vector.load %arg6[%c0_11, %c0_12] : memref<32x5xf32, #tpu.memory_space<vmem>>, vector<32x5xf32>
    %cst_13 = arith.constant dense<0.000000e+00> : vector<8x5xf32>
    %13 = tpu.matmul %11, %12, %cst_13 {dimension_numbers = #tpu.dot_dimension_numbers<[1], [0], [0], [1], [0, 0, 1, 1], [], []>} : vector<8x32xf32>, vector<32x5xf32>, vector<8x5xf32> -> vector<8x5xf32>
    %c0_14 = arith.constant 0 : index
    %c0_15 = arith.constant 0 : index
    %14 = vector.load %arg7[%c0_14, %c0_15] : memref<1x5xf32, #tpu.memory_space<vmem>>, vector<1x5xf32>
    %15 = vector.broadcast %14 : vector<1x5xf32> to vector<8x5xf32>
    %16 = arith.addf %13, %15 : vector<8x5xf32>
    %c0_16 = arith.constant 0 : index
    %c0_17 = arith.constant 0 : index
    %17 = vector.load %arg8[%c0_16, %c0_17] : memref<8x5xf32, #tpu.memory_space<vmem>>, vector<8x5xf32>
    tpu.vector_store %arg8[%c0_16, %c0_17], %16 {strides = array<i32>} : memref<8x5xf32, #tpu.memory_space<vmem>>, vector<8x5xf32>,
    return
  }
  func.func @transform_0(%arg0: i32) -> (i32, i32) {
    %c0_i32 = arith.constant 0 : i32
    %c0_i32_0 = arith.constant 0 : i32
    return %arg0, %c0_i32 : i32, i32
  }
  func.func @transform_1(%arg0: i32) -> (i32, i32) {
    %c0_i32 = arith.constant 0 : i32
    %c0_i32_0 = arith.constant 0 : i32
    return %arg0, %c0_i32 : i32, i32
  }
  func.func @transform_2(%arg0: i32) -> (i32, i32) {
    %c0_i32 = arith.constant 0 : i32
    %c0_i32_0 = arith.constant 0 : i32
    %c0_i32_1 = arith.constant 0 : i32
    return %c0_i32, %c0_i32_0 : i32, i32
  }
  func.func @transform_3(%arg0: i32) -> (i32, i32) {
    %c0_i32 = arith.constant 0 : i32
    %c0_i32_0 = arith.constant 0 : i32
    %c0_i32_1 = arith.constant 0 : i32
    return %c0_i32, %c0_i32_0 : i32, i32
  }
  func.func @transform_4(%arg0: i32) -> (i32, i32) {
    %c0_i32 = arith.constant 0 : i32
    %c0_i32_0 = arith.constant 0 : i32
    %c0_i32_1 = arith.constant 0 : i32
    return %c0_i32, %c0_i32_0 : i32, i32
  }
  func.func @transform_5(%arg0: i32) -> (i32, i32) {
    %c0_i32 = arith.constant 0 : i32
    %c0_i32_0 = arith.constant 0 : i32
    %c0_i32_1 = arith.constant 0 : i32
    return %c0_i32, %c0_i32_0 : i32, i32
  }
  func.func @transform_6(%arg0: i32) -> (i32, i32) {
    %c0_i32 = arith.constant 0 : i32
    %c0_i32_0 = arith.constant 0 : i32
    %c0_i32_1 = arith.constant 0 : i32
    return %c0_i32, %c0_i32_0 : i32, i32
  }
  func.func @transform_7(%arg0: i32) -> (i32, i32) {
    %c0_i32 = arith.constant 0 : i32
    %c0_i32_0 = arith.constant 0 : i32
    return %arg0, %c0_i32 : i32, i32
  }
}

</mosaic_0001>

<llo_original>
// kernel: tpu_custom_call.1
$region0: #{tpu_custom_call.1}
  #allocation0 [shape = 'u32[]', space=smem, size = 0x4, offset = 0x4, fixed_abs, tag = 'smem constant byte address 0x4 - core index']
  #allocation1 [shape = 'u32[144,128]{1,0:T(1,128)}', space=vmem, size = 0x12000, scoped, tag = 'internal scratch']
  %s0 = inlined_call_operand.vmem [shape: f32[8,32], index: 0, kind: input, shape index: {}]
  %s1 = inlined_call_operand.hbm [shape: f32[8,32], index: 1, kind: input, shape index: {}]
  %s2 = inlined_call_operand.vmem [shape: f32[32,32], index: 2, kind: input, shape index: {}]
  %s3 = inlined_call_operand.hbm [shape: f32[32,32], index: 3, kind: input, shape index: {}]
  %s4 = inlined_call_operand.vmem [shape: f32[1,32], index: 4, kind: input, shape index: {}]
  %s5 = inlined_call_operand.vmem [shape: f32[32,5], index: 5, kind: input, shape index: {}]
  %s6 = inlined_call_operand.vmem [shape: f32[1,5], index: 6, kind: input, shape index: {}]
  %s7 = inlined_call_operand.hbm [shape: f32[8,5], index: 7, kind: output, shape index: {}]
  %s8 = sld [smem:[#allocation0]]
  $region46: #{tpu_custom_call.1} parent=0
    _
  %s10 = ssub.s32 1, %s8
  %s11 = scalar_select 0, %s10, %s8
  $region1: #{tpu_custom_call.1} parent=0
    #allocation2 [shape = 'u8[4096]{0}', space=vmem, size = 0x1000, scoped, tag = 'input window, operand 1, single buffered']
    #allocation3 [shape = 's32[1]{0}', space=sflag, size = 0x4, scoped, tag = 'scoped memory for tpu_custom_call.1']
    #allocation4 [shape = 's32[1]{0}', space=sflag, size = 0x4, scoped, tag = 'scoped memory for tpu_custom_call.1']
    #allocation5 [shape = 'u8[16384]{0}', space=vmem, size = 0x4000, scoped, tag = 'input window, operand 3, single buffered']
    #allocation6 [shape = 's32[1]{0}', space=sflag, size = 0x4, scoped, tag = 'scoped memory for tpu_custom_call.1']
    #allocation7 [shape = 'u8[4096]{0}', space=vmem, size = 0x1000, scoped, tag = 'output window, operand 0, single buffered']
    %12 = vsyncpa [#allocation3], 0
    %13 = vsyncpa [#allocation6], 0
    %14 = vsyncpa [#allocation4], 0
    // Predicated region
    $region2: #{tpu_custom_call.1} parent=1 // pred_check
      _
    $region3: #{tpu_custom_call.1} parent=1 // pred_check_branch
      %16 = sbr.rel (0) target = $region5
    $region4: #{tpu_custom_call.1} parent=1 // pred_region
      _
    $region5: #{tpu_custom_call.1} parent=1 // pred_fallthru
      _
    // Predicated region
    $region6: #{tpu_custom_call.1} parent=1 // pred_check
      _
    $region7: #{tpu_custom_call.1} parent=1 // pred_check_branch
      %18 = sbr.rel (0) target = $region9
    $region8: #{tpu_custom_call.1} parent=1 // pred_region
      %s20 = ssub.s32 128, 128
      %21 = vsyncadd [#allocation3], %s20
      %s23 = sshll.u32 [#allocation2], 4
      %s24 = int_to_ptr.vmem [resolvable:$true] %s23
      %26 = dma.hbm_to_vmem [thread:$0]  %s1, 128, %s24, [#allocation3]
    $region9: #{tpu_custom_call.1} parent=1 // pred_fallthru
      _
    // Predicated region
    $region10: #{tpu_custom_call.1} parent=1 // pred_check
      _
    $region11: #{tpu_custom_call.1} parent=1 // pred_check_branch
      %28 = sbr.rel (0) target = $region13
    $region12: #{tpu_custom_call.1} parent=1 // pred_region
      _
    $region13: #{tpu_custom_call.1} parent=1 // pred_fallthru
      _
    // Predicated region
    $region14: #{tpu_custom_call.1} parent=1 // pred_check
      _
    $region15: #{tpu_custom_call.1} parent=1 // pred_check_branch
      %30 = sbr.rel (0) target = $region17
    $region16: #{tpu_custom_call.1} parent=1 // pred_region
      %s32 = ssub.s32 512, 512
      %33 = vsyncadd [#allocation6], %s32
      %s34 = sshll.u32 [#allocation5], 4
      %s35 = int_to_ptr.vmem [resolvable:$true] %s34
      %40 = dma.hbm_to_vmem [thread:$0]  %s3, 512, %s35, [#allocation6], 128, 128, 8
    $region17: #{tpu_custom_call.1} parent=1 // pred_fallthru
      _
    // Predicated region
    $region18: #{tpu_custom_call.1} parent=1 // pred_check
      _
    $region19: #{tpu_custom_call.1} parent=1 // pred_check_branch
      %42 = sbr.rel (0) target = $region21
    $region20: #{tpu_custom_call.1} parent=1 // pred_region
      _
    $region21: #{tpu_custom_call.1} parent=1 // pred_fallthru
      _
    // Predicated region
    $region22: #{tpu_custom_call.1} parent=1 // pred_check
      _
    $region23: #{tpu_custom_call.1} parent=1 // pred_check_branch
      %44 = sbr.rel (0) target = $region25
    $region24: #{tpu_custom_call.1} parent=1 // pred_region
      _
    $region25: #{tpu_custom_call.1} parent=1 // pred_fallthru
      _
    // Predicated region
    $region26: #{tpu_custom_call.1} parent=1 // pred_check
      _
    $region27: #{tpu_custom_call.1} parent=1 // pred_check_branch
      %46 = sbr.rel (0) target = $region29
    $region28: #{tpu_custom_call.1} parent=1 // pred_region
      _
    $region29: #{tpu_custom_call.1} parent=1 // pred_fallthru
      _
    // Predicated region
    $region30: #{tpu_custom_call.1} parent=1 // pred_check
      _
    $region31: #{tpu_custom_call.1} parent=1 // pred_check_branch
      %48 = sbr.rel (0) target = $region33
    $region32: #{tpu_custom_call.1} parent=1 // pred_region
      %49 = dma.done [#allocation3], 128
    $region33: #{tpu_custom_call.1} parent=1 // pred_fallthru
      _
    // Predicated region
    $region34: #{tpu_custom_call.1} parent=1 // pred_check
      _
    $region35: #{tpu_custom_call.1} parent=1 // pred_check_branch
      %51 = sbr.rel (0) target = $region37
    $region36: #{tpu_custom_call.1} parent=1 // pred_region
      %52 = dma.done [#allocation6], 512
    $region37: #{tpu_custom_call.1} parent=1 // pred_fallthru
      _
    %v53 = vld [vmem:[%s0] sm:$0xff]
    %v54 = vld [vmem:[%s2] sm:$0xff]
    %v55 = vld [vmem:[%s2 + $0x8] sm:$0xff]
    %v56 = vld [vmem:[%s2 + $0x10] sm:$0xff]
    %v57 = vld [vmem:[%s2 + $0x18] sm:$0xff]
    %v58 = vld [vmem:[#allocation2] sm:$0xff]
    %v59 = vld [vmem:[#allocation5] sm:$0xff]
    %v60 = vld [vmem:[#allocation5 + $0x8] sm:$0xff]
    %v61 = vld [vmem:[#allocation5 + $0x10] sm:$0xff]
    %v62 = vld [vmem:[#allocation5 + $0x18] sm:$0xff]
    %vm63 = vcmask 261120
    %v65 = vsel %vm63, %v58, 0
    %67 = vmatprep.subr.mxu0 0.0
    %68 = vmatpush1.msra.mxu0 %v59
    %69 = vmatprep.subr.mxu0 0.0
    %70 = vmatpush1.msra.mxu0 %v60
    %71 = vmatprep.subr.mxu0 0.0
    %72 = vmatpush1.msra.mxu0 %v61
    %73 = vmatprep.subr.mxu0 0.0
    %74 = vmatpush1.msra.mxu0 %v62
    %75 = vmatprep.subr.mxu0 0.0
    %76 = vmatpush1.msra.mxu0 0.0
    %77 = vmatprep.subr.mxu0 0.0
    %78 = vmatpush1.msra.mxu0 0.0
    %79 = vmatprep.subr.mxu0 0.0
    %80 = vmatpush1.msra.mxu0 0.0
    %81 = vmatprep.subr.mxu0 0.0
    %82 = vmatpush1.msra.mxu0 0.0
    %83 = vmatprep.subr.mxu0 0.0
    %84 = vmatpush1.msra.mxu0 0.0
    %85 = vmatprep.subr.mxu0 0.0
    %86 = vmatpush1.msra.mxu0 0.0
    %87 = vmatprep.subr.mxu0 0.0
    %88 = vmatpush1.msra.mxu0 0.0
    %89 = vmatprep.subr.mxu0 0.0
    %90 = vmatpush1.msra.mxu0 0.0
    %91 = vmatprep.subr.mxu0 0.0
    %92 = vmatpush1.msra.mxu0 0.0
    %93 = vmatprep.subr.mxu0 0.0
    %94 = vmatpush1.msra.mxu0 0.0
    %95 = vmatprep.subr.mxu0 0.0
    %96 = vmatpush1.msra.mxu0 0.0
    %97 = vmatprep.subr.mxu0 0.0
    %98 = vmatpush1.msra.mxu0 0.0
    %99 = vmatprep.subr.mxu0 0.0
    %100 = vmatpush1.msra.mxu0 0.0
    %101 = vmatprep.subr.mxu0 0.0
    %102 = vmatpush1.msra.mxu0 0.0
    %103 = vmatprep.subr.mxu0 0.0
    %104 = vmatpush1.msra.mxu0 0.0
    %105 = vmatprep.subr.mxu0 0.0
    %106 = vmatpush1.msra.mxu0 0.0
    %107 = vmatprep.subr.mxu0 0.0
    %108 = vmatpush1.msra.mxu0 0.0
    %109 = vmatprep.subr.mxu0 0.0
    %110 = vmatpush1.msra.mxu0 0.0
    %111 = vmatprep.subr.mxu0 0.0
    %112 = vmatpush1.msra.mxu0 0.0
    %113 = vmatprep.subr.mxu0 0.0
    %114 = vmatpush1.msra.mxu0 0.0
    %115 = vmatprep.subr.mxu0 0.0
    %116 = vmatpush1.msra.mxu0 0.0
    %117 = vmatprep.subr.mxu0 0.0
    %118 = vmatpush1.msra.mxu0 0.0
    %119 = vmatprep.subr.mxu0 0.0
    %120 = vmatpush1.msra.mxu0 0.0
    %121 = vmatprep.subr.mxu0 0.0
    %122 = vmatpush1.msra.mxu0 0.0
    %123 = vmatprep.subr.mxu0 0.0
    %124 = vmatpush1.msra.mxu0 0.0
    %125 = vmatprep.subr.mxu0 0.0
    %126 = vmatpush1.msra.mxu0 0.0
    %127 = vmatprep.subr.mxu0 0.0
    %128 = vmatpush1.msra.mxu0 0.0
    %129 = vmatprep.subr.mxu0 0.0
    %130 = vmatpush1.msra.mxu0 0.0
    %131 = vmatprep.mubr.f32.mxu0 0.0
    %132 = vmatmul.mubr.f32.gmra.mrb[0].mxu0 %v65
    %v133 = vpop.f32.mrb[0].mxu0
    %v134 = vadd.f32 0.0, %v133
    %v135 = vpop.f32.mrb[0].mxu0
    %136 = vdwg.mxu0
    %v138 = vsel %vm63, %v53, 0
    %140 = vmatprep.subr.mxu0 0.0
    %141 = vmatpush1.msra.mxu0 %v54
    %142 = vmatprep.subr.mxu0 0.0
    %143 = vmatpush1.msra.mxu0 %v55
    %144 = vmatprep.subr.mxu0 0.0
    %145 = vmatpush1.msra.mxu0 %v56
    %146 = vmatprep.subr.mxu0 0.0
    %147 = vmatpush1.msra.mxu0 %v57
    %148 = vmatprep.subr.mxu0 0.0
    %149 = vmatpush1.msra.mxu0 0.0
    %150 = vmatprep.subr.mxu0 0.0
    %151 = vmatpush1.msra.mxu0 0.0
    %152 = vmatprep.subr.mxu0 0.0
    %153 = vmatpush1.msra.mxu0 0.0
    %154 = vmatprep.subr.mxu0 0.0
    %155 = vmatpush1.msra.mxu0 0.0
    %156 = vmatprep.subr.mxu0 0.0
    %157 = vmatpush1.msra.mxu0 0.0
    %158 = vmatprep.subr.mxu0 0.0
    %159 = vmatpush1.msra.mxu0 0.0
    %160 = vmatprep.subr.mxu0 0.0
    %161 = vmatpush1.msra.mxu0 0.0
    %162 = vmatprep.subr.mxu0 0.0
    %163 = vmatpush1.msra.mxu0 0.0
    %164 = vmatprep.subr.mxu0 0.0
    %165 = vmatpush1.msra.mxu0 0.0
    %166 = vmatprep.subr.mxu0 0.0
    %167 = vmatpush1.msra.mxu0 0.0
    %168 = vmatprep.subr.mxu0 0.0
    %169 = vmatpush1.msra.mxu0 0.0
    %170 = vmatprep.subr.mxu0 0.0
    %171 = vmatpush1.msra.mxu0 0.0
    %172 = vmatprep.subr.mxu0 0.0
    %173 = vmatpush1.msra.mxu0 0.0
    %174 = vmatprep.subr.mxu0 0.0
    %175 = vmatpush1.msra.mxu0 0.0
    %176 = vmatprep.subr.mxu0 0.0
    %177 = vmatpush1.msra.mxu0 0.0
    %178 = vmatprep.subr.mxu0 0.0
    %179 = vmatpush1.msra.mxu0 0.0
    %180 = vmatprep.subr.mxu0 0.0
    %181 = vmatpush1.msra.mxu0 0.0
    %182 = vmatprep.subr.mxu0 0.0
    %183 = vmatpush1.msra.mxu0 0.0
    %184 = vmatprep.subr.mxu0 0.0
    %185 = vmatpush1.msra.mxu0 0.0
    %186 = vmatprep.subr.mxu0 0.0
    %187 = vmatpush1.msra.mxu0 0.0
    %188 = vmatprep.subr.mxu0 0.0
    %189 = vmatpush1.msra.mxu0 0.0
    %190 = vmatprep.subr.mxu0 0.0
    %191 = vmatpush1.msra.mxu0 0.0
    %192 = vmatprep.subr.mxu0 0.0
    %193 = vmatpush1.msra.mxu0 0.0
    %194 = vmatprep.subr.mxu0 0.0
    %195 = vmatpush1.msra.mxu0 0.0
    %196 = vmatprep.subr.mxu0 0.0
    %197 = vmatpush1.msra.mxu0 0.0
    %198 = vmatprep.subr.mxu0 0.0
    %199 = vmatpush1.msra.mxu0 0.0
    %200 = vmatprep.subr.mxu0 0.0
    %201 = vmatpush1.msra.mxu0 0.0
    %202 = vmatprep.subr.mxu0 0.0
    %203 = vmatpush1.msra.mxu0 0.0
    %204 = vmatprep.mubr.f32.mxu0 0.0
    %205 = vmatmul.mubr.f32.gmra.mrb[0].mxu0 %v138
    %v206 = vpop.f32.mrb[0].mxu0
    %v207 = vadd.f32 %v134, %v206
    %v208 = vpop.f32.mrb[0].mxu0
    %209 = vdwg.mxu0
    %v210 = vld [vmem:[%s4] sm:$0x1]
    %v212 = vlaneseq
    %v213 = vshrl.u32 %v212, 7
    %v214 = vsub.s32 0, %v213
    %v215 = vrot.slane %v210, %v214
    %v217 = vadd.f32 %v207, %v215
    %v218 = vmax.f32 %v217, 0.0
    %v219 = vld [vmem:[%s5] sm:$0xff]
    %v220 = vld [vmem:[%s5 + $0x8] sm:$0xff]
    %v221 = vld [vmem:[%s5 + $0x10] sm:$0xff]
    %v222 = vld [vmem:[%s5 + $0x18] sm:$0xff]
    %v223 = vld [vmem:[%s6] sm:$0x1]
    %v225 = vlaneseq
    %v226 = vshrl.u32 %v225, 7
    %v227 = vsub.s32 0, %v226
    %v228 = vrot.slane %v223, %v227
    %v231 = vsel %vm63, %v218, 0
    %233 = vmatprep.subr.mxu0 0.0
    %234 = vmatpush1.msra.mxu0 %v219
    %235 = vmatprep.subr.mxu0 0.0
    %236 = vmatpush1.msra.mxu0 %v220
    %237 = vmatprep.subr.mxu0 0.0
    %238 = vmatpush1.msra.mxu0 %v221
    %239 = vmatprep.subr.mxu0 0.0
    %240 = vmatpush1.msra.mxu0 %v222
    %241 = vmatprep.subr.mxu0 0.0
    %242 = vmatpush1.msra.mxu0 0.0
    %243 = vmatprep.subr.mxu0 0.0
    %244 = vmatpush1.msra.mxu0 0.0
    %245 = vmatprep.subr.mxu0 0.0
    %246 = vmatpush1.msra.mxu0 0.0
    %247 = vmatprep.subr.mxu0 0.0
    %248 = vmatpush1.msra.mxu0 0.0
    %249 = vmatprep.subr.mxu0 0.0
    %250 = vmatpush1.msra.mxu0 0.0
    %251 = vmatprep.subr.mxu0 0.0
    %252 = vmatpush1.msra.mxu0 0.0
    %253 = vmatprep.subr.mxu0 0.0
    %254 = vmatpush1.msra.mxu0 0.0
    %255 = vmatprep.subr.mxu0 0.0
    %256 = vmatpush1.msra.mxu0 0.0
    %257 = vmatprep.subr.mxu0 0.0
    %258 = vmatpush1.msra.mxu0 0.0
    %259 = vmatprep.subr.mxu0 0.0
    %260 = vmatpush1.msra.mxu0 0.0
    %261 = vmatprep.subr.mxu0 0.0
    %262 = vmatpush1.msra.mxu0 0.0
    %263 = vmatprep.subr.mxu0 0.0
    %264 = vmatpush1.msra.mxu0 0.0
    %265 = vmatprep.subr.mxu0 0.0
    %266 = vmatpush1.msra.mxu0 0.0
    %267 = vmatprep.subr.mxu0 0.0
    %268 = vmatpush1.msra.mxu0 0.0
    %269 = vmatprep.subr.mxu0 0.0
    %270 = vmatpush1.msra.mxu0 0.0
    %271 = vmatprep.subr.mxu0 0.0
    %272 = vmatpush1.msra.mxu0 0.0
    %273 = vmatprep.subr.mxu0 0.0
    %274 = vmatpush1.msra.mxu0 0.0
    %275 = vmatprep.subr.mxu0 0.0
    %276 = vmatpush1.msra.mxu0 0.0
    %277 = vmatprep.subr.mxu0 0.0
    %278 = vmatpush1.msra.mxu0 0.0
    %279 = vmatprep.subr.mxu0 0.0
    %280 = vmatpush1.msra.mxu0 0.0
    %281 = vmatprep.subr.mxu0 0.0
    %282 = vmatpush1.msra.mxu0 0.0
    %283 = vmatprep.subr.mxu0 0.0
    %284 = vmatpush1.msra.mxu0 0.0
    %285 = vmatprep.subr.mxu0 0.0
    %286 = vmatpush1.msra.mxu0 0.0
    %287 = vmatprep.subr.mxu0 0.0
    %288 = vmatpush1.msra.mxu0 0.0
    %289 = vmatprep.subr.mxu0 0.0
    %290 = vmatpush1.msra.mxu0 0.0
    %291 = vmatprep.subr.mxu0 0.0
    %292 = vmatpush1.msra.mxu0 0.0
    %293 = vmatprep.subr.mxu0 0.0
    %294 = vmatpush1.msra.mxu0 0.0
    %295 = vmatprep.subr.mxu0 0.0
    %296 = vmatpush1.msra.mxu0 0.0
    %297 = vmatprep.mubr.f32.mxu0 0.0
    %298 = vmatmul.mubr.f32.gmra.mrb[0].mxu0 %v231
    %v299 = vpop.f32.mrb[0].mxu0
    %v300 = vadd.f32 %v228, %v299
    %v301 = vpop.f32.mrb[0].mxu0
    %302 = vdwg.mxu0
    %vm303 = vcmask 39936
    %304 = vst.msk [vmem:[#allocation7] sm:$0xff] %vm303, %v300
    // Predicated region
    $region38: #{tpu_custom_call.1} parent=1 // pred_check
      _
    $region39: #{tpu_custom_call.1} parent=1 // pred_check_branch
      %306 = sbr.rel (0) target = $region41
    $region40: #{tpu_custom_call.1} parent=1 // pred_region
      %s308 = ssub.s32 128, 128
      %309 = vsyncadd [#allocation4], %s308
      %s311 = sshll.u32 [#allocation7], 4
      %s312 = int_to_ptr.vmem [resolvable:$true] %s311
      %314 = dma.vmem_to_hbm [thread:$0]  %s312, 128, %s7, [#allocation4]
    $region41: #{tpu_custom_call.1} parent=1 // pred_fallthru
      _
    // Predicated region
    $region42: #{tpu_custom_call.1} parent=1 // pred_check
      _
    $region43: #{tpu_custom_call.1} parent=1 // pred_check_branch
      %316 = sbr.rel (0) target = $region45
    $region44: #{tpu_custom_call.1} parent=1 // pred_region
      %317 = dma.done [#allocation4], 128
    $region45: #{tpu_custom_call.1} parent=1 // pred_fallthru
      _
    %318 = vsyncpa [#allocation3], 1
    %319 = vsyncpa [#allocation6], 1
    %320 = vsyncpa [#allocation4], 1

</llo_original>
